<compile_context>
chip_gen: v7x
topology: tpu7x:2x2x1
jax: 0.10.0
libtpu: 0.0.40
codegen_flags: <defaults>
</compile_context>

<pallas_src>
from functools import partial

import numpy as np
import jax
import jax.numpy as jnp
from jax.experimental import pallas as pl
from jax.experimental.pallas import tpu as pltpu


# ----------------------------- Pallas kernel --------------------------------
def _rope_kernel(pos_ref, freqs_ref, q_ref, k_ref, oq_ref, ok_ref, *, n_dims):
    hd = q_ref.shape[-1]                       # n_heads * head_dim (lane width)

    # angles: (TL, HD) = sum_d pos[:, d] * freqs_dup[d, :]
    # Unrolled VPU FMA over the tiny n_dims axis (MXU would pad K to 128/256).
    pos = pos_ref[...]                         # (TL, n_dims) f32
    angles = pos[:, 0:1] * freqs_ref[0:1, :]
    for d in range(1, n_dims):
        angles = angles + pos[:, d:d + 1] * freqs_ref[d:d + 1, :]

    c = jnp.cos(angles)                        # already interleaved (pairs duplicated)
    s = jnp.sin(angles)

    # Pair parity along the lane axis (head_dim even -> lane parity == pair parity).
    lane = jax.lax.broadcasted_iota(jnp.int32, angles.shape, 1)
    is_even = (lane & 1) == 0
    # Sign folded into sin once; shared by the q and k rotations below.
    s_alt = jnp.where(is_even, -s, s)          # -sin on even lanes, +sin on odd lanes

    def rotate(x_ref, o_ref):
        x = x_ref[...].astype(jnp.float32)
        # partner[2f] = x[2f+1], partner[2f+1] = x[2f].  The roll wrap-around
        # (lane 0 / hd-1) is never selected by the parity mask because head_dim
        # is even, so no cross-head / cross-row contamination.
        partner = jnp.where(is_even,
                            pltpu.roll(x, shift=hd - 1, axis=1),   # x[i+1]
                            pltpu.roll(x, shift=1, axis=1))        # x[i-1]
        o_ref[...] = (x * c + partner * s_alt).astype(o_ref.dtype)

    rotate(q_ref, oq_ref)
    rotate(k_ref, ok_ref)


# --------------------------- Tile / VMEM policy ------------------------------
def _vmem_caps():
    """Returns (tile budget bytes, scoped vmem limit bytes, two_tensorcores)."""
    cap = None
    try:
        info = pltpu.get_tpu_info()
        for name in ("vmem_capacity_bytes", "vmem_size_bytes", "vmem_bytes"):
            v = getattr(info, name, None)
            if isinstance(v, (int, np.integer)) and int(v) > 0:
                cap = int(v)
                break
    except Exception:
        cap = None
    if cap is None:
        cap = 128 * 1024 * 1024
    if cap < 100 * 1024 * 1024:
        # v7x-class: 64 MiB VMEM per TensorCore, 2 TCs share the parallel grid.
        return 24 * 1024 * 1024, 32 * 1024 * 1024, True
    # v5e / v6e: 128 MiB VMEM, single TensorCore -> raise budget + scoped limit.
    return 48 * 1024 * 1024, 64 * 1024 * 1024, False


def _choose_row_tile(L, HD, itemsize, budget, two_tc, row_gran):
    """Largest row tile (multiple of row_gran) that fits the VMEM budget."""
    def rup(x):
        return max(row_gran, ((x + row_gran - 1) // row_gran) * row_gran)

    bytes_per_row = (
        8 * HD * itemsize        # q/k in + out tiles, double-buffered
        + 8 * HD * 4             # in-kernel f32 temporaries (c, s_alt, x, rolls, out)
        + 2 * 128 * 4            # positions tile (lane-padded), double-buffered
    )
    tl = int(budget // bytes_per_row)
    tl = max(row_gran, min(tl, 2048))
    tl = (tl // row_gran) * row_gran

    # Keep enough grid steps to keep the DMA pipeline busy; on 2-TC parts (v7x)
    # keep >= 4 so each core gets >= 2 steps.  Do NOT over-split on 1-TC chips.
    min_steps = 4 if two_tc else 2
    tl = max(row_gran, min(tl, rup(pl.cdiv(L, min_steps))))

    # v7x: prefer an even number of grid steps so neither TC idles on the last one.
    if two_tc:
        steps = pl.cdiv(L, tl)
        if steps > 1 and steps % 2 == 1:
            tl2 = rup(pl.cdiv(L, steps + 1))
            if pl.cdiv(L, tl2) % 2 == 0:
                tl = tl2
    return tl


def _rope_pallas(pos, freqs_flat, q, k, *, tl, steps, n_dims, vmem_limit):
    L, HD = q.shape
    row_spec = pl.BlockSpec((tl, HD), lambda i: (i, 0))
    out_struct = jax.ShapeDtypeStruct((L, HD), q.dtype)

    return pl.pallas_call(
        partial(_rope_kernel, n_dims=n_dims),
        out_shape=(out_struct, out_struct),
        grid_spec=pltpu.PrefetchScalarGridSpec(
            num_scalar_prefetch=0,
            grid=(steps,),
            in_specs=[
                pl.BlockSpec((tl, n_dims), lambda i: (i, 0)),    # positions tile
                pl.BlockSpec((n_dims, HD), lambda i: (0, 0)),    # pair-duplicated freqs
                row_spec,                                        # q slab
                row_spec,                                        # k slab
            ],
            out_specs=[row_spec, row_spec],
        ),
        compiler_params=pltpu.CompilerParams(
            dimension_semantics=("parallel",),
            vmem_limit_bytes=vmem_limit,
        ),
    )(pos, freqs_flat, q, k)


# ------------------------------ Module wrapper -------------------------------
class RoPEEncodingND:
    """JAX/Pallas port of emsim RoPEEncodingND (forward only)."""

    def __init__(self, n_dims: int, n_heads: int, head_dim: int):
        assert head_dim % 2 == 0
        self.n_dims = n_dims
        self.n_heads = n_heads
        self.head_dim = head_dim
        self.freqs = self._init_freqs()  # (n_dims, n_heads, head_dim//2)

        # Cached lane-slab view of the freqs (built once, not per call):
        # freqs_flat[d, h*Dh + 2f] == freqs_flat[d, h*Dh + 2f + 1] == freqs[d, h, f],
        # zero-padded on the lane axis to a multiple of 128 (lane-dense stores).
        self._hd = n_heads * head_dim
        self._hd_pad = -(-self._hd // 128) * 128
        self._freqs_flat = self._build_flat_freqs()

    def _init_freqs(self):
        # Deterministic init: classic RoPE inverse-frequency spectrum per pair,
        # shared across heads, with a per-spatial-dim scale so dims differ.
        # TODO(synk): the torch module's init_freq_params/reset_paramters are
        # unspecified in the spec; this deterministic init stands in for them.
        dh2 = self.head_dim // 2
        base = 10000.0
        inv_freq = base ** (-np.arange(dh2, dtype=np.float64) / dh2)
        dim_scale = 1.0 / (1.0 + np.arange(self.n_dims, dtype=np.float64))
        freqs = dim_scale[:, None, None] * inv_freq[None, None, :]
        freqs = np.broadcast_to(freqs, (self.n_dims, self.n_heads, dh2))
        return jnp.asarray(freqs, dtype=jnp.float32)

    def _build_flat_freqs(self):
        fd = jnp.repeat(self.freqs.astype(jnp.float32), 2, axis=-1)
        fd = fd.reshape(self.n_dims, self._hd)
        if self._hd_pad != self._hd:
            fd = jnp.pad(fd, ((0, 0), (0, self._hd_pad - self._hd)))
        return fd

    def get_freqs(self):
        return self.freqs

    def __call__(self, xq, xk, positions):
        assert xq.shape[-1] == xk.shape[-1] == self.head_dim
        assert xq.shape[-2] == xk.shape[-2] == self.n_heads
        assert positions.shape[-1] == self.n_dims
        assert xq.shape == xk.shape

        lead = xq.shape[:-2]
        H, Dh = self.n_heads, self.head_dim
        HD, HDp = self._hd, self._hd_pad
        L = int(np.prod(lead)) if lead else 1

        # Broadcast positions over the leading dims of xq (module contract).
        pos = jnp.broadcast_to(positions, lead + (self.n_dims,))
        pos = pos.reshape(L, self.n_dims).astype(jnp.float32)

        # Native interleaved lane slabs (pure reshape views, no HBM repack).
        q = xq.reshape(L, HD)
        k = xk.reshape(L, HD)
        if HDp != HD:
            # Rare-config guard (head_dim*n_heads not a multiple of 128): pad the
            # lane axis once so output stores stay unmasked; sliced back below.
            q = jnp.pad(q, ((0, 0), (0, HDp - HD)))
            k = jnp.pad(k, ((0, 0), (0, HDp - HD)))

        budget, vmem_limit, two_tc = _vmem_caps()
        row_gran = max(8, 32 // max(1, q.dtype.itemsize))   # 8 f32 / 16 bf16 / 32 int8
        tl = _choose_row_tile(L, HDp, q.dtype.itemsize, budget, two_tc, row_gran)
        steps = pl.cdiv(L, tl)

        # Ragged L: q/k are NOT padded (Pallas masks the partial last block's
        # stores); only the tiny positions array is padded so tail-block angles
        # stay finite.
        L_pos = steps * tl
        if L_pos != L:
            pos = jnp.pad(pos, ((0, L_pos - L), (0, 0)))

        oq, ok = _rope_pallas(pos, self._freqs_flat, q, k,
                              tl=tl, steps=steps, n_dims=self.n_dims,
                              vmem_limit=vmem_limit)

        if HDp != HD:
            oq = oq[:, :HD]
            ok = ok[:, :HD]
        return (oq.reshape(lead + (H, Dh)),
                ok.reshape(lead + (H, Dh)))


# ------------------------- Pure-JAX reference check --------------------------
def _rope_ref(xq, xk, positions, freqs):
    angles = jnp.einsum("...d,dhf->...hf", positions.astype(jnp.float32), freqs)
    c, s = jnp.cos(angles), jnp.sin(angles)

    def rot(x):
        shp = x.shape
        xp = x.reshape(shp[:-1] + (shp[-1] // 2, 2)).astype(jnp.float32)
        e, o = xp[..., 0], xp[..., 1]
        return jnp.stack([e * c - o * s, e * s + o * c],
                         axis=-1).reshape(shp).astype(x.dtype)

    return rot(xq), rot(xk)


if __name__ == "__main__":
    key = jax.random.PRNGKey(0)

    def check(n_dims, n_heads, head_dim, lead):
        sub = jax.random.fold_in(key, n_dims * 1000 + n_heads * 100 + head_dim)
        k1, k2, k3 = jax.random.split(sub, 3)
        xq = jax.random.normal(k1, lead + (n_heads, head_dim), jnp.float32)
        xk = jax.random.normal(k2, lead + (n_heads, head_dim), jnp.float32)
        positions = jax.random.uniform(k3, lead + (n_dims,), jnp.float32) * 16.0

        mod = RoPEEncodingND(n_dims, n_heads, head_dim)
        q_out, k_out = mod(xq, xk, positions)
        q_out = jax.block_until_ready(q_out)
        k_out = jax.block_until_ready(k_out)

        q_ref, k_ref = _rope_ref(xq, xk, positions, mod.get_freqs())
        assert q_out.shape == xq.shape and k_out.shape == xk.shape
        np.testing.assert_allclose(np.asarray(q_out), np.asarray(q_ref),
                                   rtol=1e-5, atol=1e-5)
        np.testing.assert_allclose(np.asarray(k_out), np.asarray(k_ref),
                                   rtol=1e-5, atol=1e-5)

    # Primary small config: HD = n_heads*head_dim = 128 lanes, L divisible by tile.
    check(2, 4, 32, (2, 8))
    # Ragged L (partial last block, no q/k padding) + multi-vreg lane width (HD=256).
    check(3, 4, 64, (2, 9))

    print("KERNEL_OK")
</pallas_src>

<mosaic_0001>
module attributes {stable_mosaic.version = 11 : i64} {
  func.func @_rope_kernel(%arg0: i32, %arg1: memref<8x2xf32, #tpu.memory_space<vmem>>, %arg2: memref<2x128xf32, #tpu.memory_space<vmem>>, %arg3: memref<8x128xf32, #tpu.memory_space<vmem>>, %arg4: memref<8x128xf32, #tpu.memory_space<vmem>>, %arg5: memref<8x128xf32, #tpu.memory_space<vmem>>, %arg6: memref<8x128xf32, #tpu.memory_space<vmem>>) attributes {dimension_semantics = [#tpu.dimension_semantics<parallel>], iteration_bounds = array<i64: 2>, scalar_prefetch = 0 : i64, scratch_operands = 0 : i64, tpu.core_type = #tpu.core_type<tc>, window_params = [{transform_indices = @transform_0, window_bounds = array<i64: 8, 2>}, {pipeline_mode = #tpu.pipeline_mode<synchronous>, transform_indices = @transform_1, window_bounds = array<i64: 2, 128>}, {transform_indices = @transform_2, window_bounds = array<i64: 8, 128>}, {transform_indices = @transform_3, window_bounds = array<i64: 8, 128>}, {transform_indices = @transform_4, window_bounds = array<i64: 8, 128>}, {transform_indices = @transform_5, window_bounds = array<i64: 8, 128>}]} {
    %c0 = arith.constant 0 : index
    %c0_0 = arith.constant 0 : index
    %0 = vector.load %arg1[%c0, %c0_0] : memref<8x2xf32, #tpu.memory_space<vmem>>, vector<8x2xf32>
    %1 = vector.extract_strided_slice %0 {offsets = [0, 0], sizes = [8, 1], strides = [1, 1]} : vector<8x2xf32> to vector<8x1xf32>
    %c0_1 = arith.constant 0 : index
    %c0_2 = arith.constant 0 : index
    %2 = vector.load %arg2[%c0_1, %c0_2] : memref<2x128xf32, #tpu.memory_space<vmem>>, vector<1x128xf32>
    %3 = vector.broadcast %1 : vector<8x1xf32> to vector<8x128xf32>
    %4 = vector.broadcast %2 : vector<1x128xf32> to vector<8x128xf32>
    %5 = arith.mulf %3, %4 : vector<8x128xf32>
    %6 = vector.extract_strided_slice %0 {offsets = [0, 1], sizes = [8, 1], strides = [1, 1]} : vector<8x2xf32> to vector<8x1xf32>
    %c1 = arith.constant 1 : index
    %c0_3 = arith.constant 0 : index
    %7 = vector.load %arg2[%c1, %c0_3] : memref<2x128xf32, #tpu.memory_space<vmem>>, vector<1x128xf32>
    %8 = vector.broadcast %6 : vector<8x1xf32> to vector<8x128xf32>
    %9 = vector.broadcast %7 : vector<1x128xf32> to vector<8x128xf32>
    %10 = arith.mulf %8, %9 : vector<8x128xf32>
    %11 = arith.addf %5, %10 : vector<8x128xf32>
    %12 = math.cos %11 : vector<8x128xf32>
    %13 = math.sin %11 : vector<8x128xf32>
    %14 = tpu.iota {dimensions = array<i32: 1>} : vector<8x128xi32>
    %c1_i32 = arith.constant 1 : i32
    %15 = vector.broadcast %c1_i32 : i32 to vector<8x128xi32>
    %16 = arith.andi %14, %15 : vector<8x128xi32>
    %c0_i32 = arith.constant 0 : i32
    %17 = vector.broadcast %c0_i32 : i32 to vector<8x128xi32>
    %18 = arith.cmpi eq, %16, %17 : vector<8x128xi32>
    %cst = arith.constant 0.000000e+00 : f32
    %19 = vector.broadcast %cst : f32 to vector<8x128xf32>
    %20 = arith.subf %19, %13 : vector<8x128xf32>
    %21 = arith.select %18, %20, %13 : vector<8x128xi1>, vector<8x128xf32>
    %c0_4 = arith.constant 0 : index
    %c0_5 = arith.constant 0 : index
    %22 = vector.load %arg3[%c0_4, %c0_5] : memref<8x128xf32, #tpu.memory_space<vmem>>, vector<8x128xf32>
    %c127_i32 = arith.constant 127 : i32
    %23 = tpu.dynamic_rotate %22 by %c127_i32 dim 1 : vector<8x128xf32>, i32 -> vector<8x128xf32>
    %c1_i32_6 = arith.constant 1 : i32
    %24 = tpu.dynamic_rotate %22 by %c1_i32_6 dim 1 : vector<8x128xf32>, i32 -> vector<8x128xf32>
    %25 = arith.select %18, %23, %24 : vector<8x128xi1>, vector<8x128xf32>
    %26 = arith.mulf %22, %12 : vector<8x128xf32>
    %27 = arith.mulf %25, %21 : vector<8x128xf32>
    %28 = arith.addf %26, %27 : vector<8x128xf32>
    %c0_7 = arith.constant 0 : index
    %c0_8 = arith.constant 0 : index
    %29 = vector.load %arg5[%c0_7, %c0_8] : memref<8x128xf32, #tpu.memory_space<vmem>>, vector<8x128xf32>
    tpu.vector_store %arg5[%c0_7, %c0_8], %28 {strides = array<i32>} : memref<8x128xf32, #tpu.memory_space<vmem>>, vector<8x128xf32>,
    %c0_9 = arith.constant 0 : index
    %c0_10 = arith.constant 0 : index
    %30 = vector.load %arg4[%c0_9, %c0_10] : memref<8x128xf32, #tpu.memory_space<vmem>>, vector<8x128xf32>
    %c127_i32_11 = arith.constant 127 : i32
    %31 = tpu.dynamic_rotate %30 by %c127_i32_11 dim 1 : vector<8x128xf32>, i32 -> vector<8x128xf32>
    %c1_i32_12 = arith.constant 1 : i32
    %32 = tpu.dynamic_rotate %30 by %c1_i32_12 dim 1 : vector<8x128xf32>, i32 -> vector<8x128xf32>
    %33 = arith.select %18, %31, %32 : vector<8x128xi1>, vector<8x128xf32>
    %34 = arith.mulf %30, %12 : vector<8x128xf32>
    %35 = arith.mulf %33, %21 : vector<8x128xf32>
    %36 = arith.addf %34, %35 : vector<8x128xf32>
    %c0_13 = arith.constant 0 : index
    %c0_14 = arith.constant 0 : index
    %37 = vector.load %arg6[%c0_13, %c0_14] : memref<8x128xf32, #tpu.memory_space<vmem>>, vector<8x128xf32>
    tpu.vector_store %arg6[%c0_13, %c0_14], %36 {strides = array<i32>} : memref<8x128xf32, #tpu.memory_space<vmem>>, vector<8x128xf32>,
    return
  }
  func.func @transform_0(%arg0: i32) -> (i32, i32) {
    %c0_i32 = arith.constant 0 : i32
    %c0_i32_0 = arith.constant 0 : i32
    return %arg0, %c0_i32 : i32, i32
  }
  func.func @transform_1(%arg0: i32) -> (i32, i32) {
    %c0_i32 = arith.constant 0 : i32
    %c0_i32_0 = arith.constant 0 : i32
    %c0_i32_1 = arith.constant 0 : i32
    return %c0_i32, %c0_i32_0 : i32, i32
  }
  func.func @transform_2(%arg0: i32) -> (i32, i32) {
    %c0_i32 = arith.constant 0 : i32
    %c0_i32_0 = arith.constant 0 : i32
    return %arg0, %c0_i32 : i32, i32
  }
  func.func @transform_3(%arg0: i32) -> (i32, i32) {
    %c0_i32 = arith.constant 0 : i32
    %c0_i32_0 = arith.constant 0 : i32
    return %arg0, %c0_i32 : i32, i32
  }
  func.func @transform_4(%arg0: i32) -> (i32, i32) {
    %c0_i32 = arith.constant 0 : i32
    %c0_i32_0 = arith.constant 0 : i32
    return %arg0, %c0_i32 : i32, i32
  }
  func.func @transform_5(%arg0: i32) -> (i32, i32) {
    %c0_i32 = arith.constant 0 : i32
    %c0_i32_0 = arith.constant 0 : i32
    return %arg0, %c0_i32 : i32, i32
  }
}

</mosaic_0001>

<llo_original>
// kernel: tpu_custom_call.1
$region0: #{tpu_custom_call.1}
  #allocation0 [shape = 'u32[]', space=smem, size = 0x4, offset = 0x4, fixed_abs, tag = 'smem constant byte address 0x4 - core index']
  #allocation1 [shape = 'u32[144,128]{1,0:T(1,128)}', space=vmem, size = 0x12000, scoped, tag = 'internal scratch']
  %s0 = inlined_call_operand.hbm [shape: f32[16,2], index: 0, kind: input, shape index: {}]
  %s1 = inlined_call_operand.hbm [shape: f32[2,128], index: 1, kind: input, shape index: {}]
  %s2 = inlined_call_operand.hbm [shape: f32[16,128], index: 2, kind: input, shape index: {}]
  %s3 = inlined_call_operand.hbm [shape: f32[16,128], index: 3, kind: input, shape index: {}]
  %s4 = inlined_call_operand.hbm [shape: f32[16,128], index: 4, kind: output, shape index: {0}]
  %s5 = inlined_call_operand.hbm [shape: f32[16,128], index: 5, kind: output, shape index: {1}]
  %6 = xla_tuple %s4, %s5
  %s7 = sld [smem:[#allocation0]]
  $region73: #{tpu_custom_call.1} parent=0
    _
  %s9 = ssub.s32 1, %s7
  %s10 = scalar_select 0, %s9, %s7
  $region1: #{tpu_custom_call.1} parent=0
    #allocation2 [shape = 'u8[8192]{0}', space=vmem, size = 0x2000, scoped, tag = 'input window, operand 0']
    #allocation3 [shape = 's32[2]{0}', space=sflag, size = 0x8, scoped, tag = 'scoped memory for tpu_custom_call.1']
    #allocation4 [shape = 's32[2]{0}', space=sflag, size = 0x8, scoped, tag = 'scoped memory for tpu_custom_call.1']
    #allocation5 [shape = 'u8[1024]{0}', space=vmem, size = 0x400, scoped, tag = 'input window, operand 1, single buffered']
    #allocation6 [shape = 's32[1]{0}', space=sflag, size = 0x4, scoped, tag = 'scoped memory for tpu_custom_call.1']
    #allocation7 [shape = 'u8[8192]{0}', space=vmem, size = 0x2000, scoped, tag = 'input window, operand 2']
    #allocation8 [shape = 'u8[8192]{0}', space=vmem, size = 0x2000, scoped, tag = 'input window, operand 3']
    #allocation9 [shape = 'u8[8192]{0}', space=vmem, size = 0x2000, scoped, tag = 'output window, operand 0']
    #allocation10 [shape = 'u8[8192]{0}', space=vmem, size = 0x2000, scoped, tag = 'output window, operand 1']
    #allocation11 [shape = 's32[2]{0}', space=sflag, size = 0x8, scoped, tag = 'scoped memory for tpu_custom_call.1']
    %11 = vsyncpa [#allocation3], 0
    %s12 = scalar_lea.sflag [#allocation3], 1
    %13 = vsyncpa %s12, 0
    %14 = vsyncpa [#allocation6], 0
    %15 = vsyncpa [#allocation4], 0
    %s16 = scalar_lea.sflag [#allocation4], 1
    %17 = vsyncpa %s16, 0
    %18 = vsyncpa [#allocation11], 0
    %s19 = scalar_lea.sflag [#allocation11], 1
    %20 = vsyncpa %s19, 0
    loop: start=0, step=1, limit=4
    $region2: #{tpu_custom_call.1} parent=1 // loop_pre_header
      _
    $region3: #{tpu_custom_call.1} parent=1 // loop_header
      %s22 = sphi 0, %s26
      %p23 = scmp.ge.s32.totalorder %s22, 4
      %s32 = sphi 0, %s34
      %s35 = sphi 0, %s32
      %s36 = sphi 0, %s35
      %s52 = sphi 0, %s36
      %s56 = sphi 0, %s56
      %s58 = sphi 0, %s56
      %s59 = sphi 0, %s58
      %s73 = sphi 0, %s59
      %s79 = sphi 0, %s81
      %s82 = sphi 0, %s79
      %s83 = sphi 0, %s82
      %s99 = sphi 0, %s83
      %s105 = sphi 0, %s107
      %s108 = sphi 0, %s105
      %s109 = sphi 0, %s108
      %s125 = sphi 0, %s109
      %s131 = sphi 0, %s133
      %s134 = sphi 0, %s131
      %s135 = sphi 0, %s134
      %s151 = sphi 0, %s135
      %s157 = sphi 0, %s159
      %s160 = sphi 0, %s157
      %s161 = sphi 0, %s160
      %s177 = sphi 0, %s161
    $region4: #{tpu_custom_call.1} parent=1 // loop_header_branch
      %25 = sbr.rel (%p23) target = $region8
    $region5: #{tpu_custom_call.1} parent=1 // loop_body
      %s27 = ssub.s32 %s22, 1
      %s28 = ssub.s32 %s22, 2
      %s29 = sadd.s32 %s22, 1
      %s30 = ssub.s32 %s22, %s29
      %p31 = scmp.eq.s32.totalorder %s30, 0
      %s33 = sadd.s32 %s32, 1
      %s34 = scalar_select %p31, %s32, %s33
      %p37 = pneg %p31
      %p38 = scmp.eq.s32.totalorder %s22, 1
      %p39 = por %p37, %p38
      %p40 = scmp.ne.s32.totalorder %s32, %s35
      %p41 = scmp.eq.s32.totalorder %s22, 0
      %p42 = por %p40, %p41
      %p43 = scmp.ne.s32.totalorder %s32, %s35
      %p44 = scmp.eq.s32.totalorder %s27, 1
      %p45 = por %p43, %p44
      %p46 = scmp.ne.s32.totalorder %s35, %s36
      %p47 = scmp.eq.s32.totalorder %s27, 0
      %p48 = por %p46, %p47
      %p49 = scmp.ne.s32.totalorder %s35, %s36
      %p50 = scmp.eq.s32.totalorder %s28, 1
      %p51 = por %p49, %p50
      %p53 = scmp.ne.s32.totalorder %s36, %s52
      %p54 = scmp.eq.s32.totalorder %s28, 0
      %p55 = por %p53, %p54
      %s57 = sadd.s32 %s56, 1
      %p60 = scmp.eq.s32.totalorder %s22, 1
      %p61 = scmp.ne.s32.totalorder %s56, %s58
      %p62 = scmp.eq.s32.totalorder %s22, 0
      %p63 = por %p61, %p62
      %p64 = scmp.ne.s32.totalorder %s56, %s58
      %p65 = scmp.eq.s32.totalorder %s27, 1
      %p66 = por %p64, %p65
      %p67 = scmp.ne.s32.totalorder %s58, %s59
      %p68 = scmp.eq.s32.totalorder %s27, 0
      %p69 = por %p67, %p68
      %p70 = scmp.ne.s32.totalorder %s58, %s59
      %p71 = scmp.eq.s32.totalorder %s28, 1
      %p72 = por %p70, %p71
      %p74 = scmp.ne.s32.totalorder %s59, %s73
      %p75 = scmp.eq.s32.totalorder %s28, 0
      %p76 = por %p74, %p75
      %s77 = ssub.s32 %s22, %s29
      %p78 = scmp.eq.s32.totalorder %s77, 0
      %s80 = sadd.s32 %s79, 1
      %s81 = scalar_select %p78, %s79, %s80
      %p84 = pneg %p78
      %p85 = scmp.eq.s32.totalorder %s22, 1
      %p86 = por %p84, %p85
      %p87 = scmp.ne.s32.totalorder %s79, %s82
      %p88 = scmp.eq.s32.totalorder %s22, 0
      %p89 = por %p87, %p88
      %p90 = scmp.ne.s32.totalorder %s79, %s82
      %p91 = scmp.eq.s32.totalorder %s27, 1
      %p92 = por %p90, %p91
      %p93 = scmp.ne.s32.totalorder %s82, %s83
      %p94 = scmp.eq.s32.totalorder %s27, 0
      %p95 = por %p93, %p94
      %p96 = scmp.ne.s32.totalorder %s82, %s83
      %p97 = scmp.eq.s32.totalorder %s28, 1
      %p98 = por %p96, %p97
      %p100 = scmp.ne.s32.totalorder %s83, %s99
      %p101 = scmp.eq.s32.totalorder %s28, 0
      %p102 = por %p100, %p101
      %s103 = ssub.s32 %s22, %s29
      %p104 = scmp.eq.s32.totalorder %s103, 0
      %s106 = sadd.s32 %s105, 1
      %s107 = scalar_select %p104, %s105, %s106
      %p110 = pneg %p104
      %p111 = scmp.eq.s32.totalorder %s22, 1
      %p112 = por %p110, %p111
      %p113 = scmp.ne.s32.totalorder %s105, %s108
      %p114 = scmp.eq.s32.totalorder %s22, 0
      %p115 = por %p113, %p114
      %p116 = scmp.ne.s32.totalorder %s105, %s108
      %p117 = scmp.eq.s32.totalorder %s27, 1
      %p118 = por %p116, %p117
      %p119 = scmp.ne.s32.totalorder %s108, %s109
      %p120 = scmp.eq.s32.totalorder %s27, 0
      %p121 = por %p119, %p120
      %p122 = scmp.ne.s32.totalorder %s108, %s109
      %p123 = scmp.eq.s32.totalorder %s28, 1
      %p124 = por %p122, %p123
      %p126 = scmp.ne.s32.totalorder %s109, %s125
      %p127 = scmp.eq.s32.totalorder %s28, 0
      %p128 = por %p126, %p127
      %s129 = ssub.s32 %s22, %s29
      %p130 = scmp.eq.s32.totalorder %s129, 0
      %s132 = sadd.s32 %s131, 1
      %s133 = scalar_select %p130, %s131, %s132
      %p136 = pneg %p130
      %p137 = scmp.eq.s32.totalorder %s22, 1
      %p138 = por %p136, %p137
      %p139 = scmp.ne.s32.totalorder %s131, %s134
      %p140 = scmp.eq.s32.totalorder %s22, 0
      %p141 = por %p139, %p140
      %p142 = scmp.ne.s32.totalorder %s131, %s134
      %p143 = scmp.eq.s32.totalorder %s27, 1
      %p144 = por %p142, %p143
      %p145 = scmp.ne.s32.totalorder %s134, %s135
      %p146 = scmp.eq.s32.totalorder %s27, 0
      %p147 = por %p145, %p146
      %p148 = scmp.ne.s32.totalorder %s134, %s135
      %p149 = scmp.eq.s32.totalorder %s28, 1
      %p150 = por %p148, %p149
      %p152 = scmp.ne.s32.totalorder %s135, %s151
      %p153 = scmp.eq.s32.totalorder %s28, 0
      %p154 = por %p152, %p153
      %s155 = ssub.s32 %s22, %s29
      %p156 = scmp.eq.s32.totalorder %s155, 0
      %s158 = sadd.s32 %s157, 1
      %s159 = scalar_select %p156, %s157, %s158
      %p162 = pneg %p156
      %p163 = scmp.eq.s32.totalorder %s22, 1
      %p164 = por %p162, %p163
      %p165 = scmp.ne.s32.totalorder %s157, %s160
      %p166 = scmp.eq.s32.totalorder %s22, 0
      %p167 = por %p165, %p166
      %p168 = scmp.ne.s32.totalorder %s157, %s160
      %p169 = scmp.eq.s32.totalorder %s27, 1
      %p170 = por %p168, %p169
      %p171 = scmp.ne.s32.totalorder %s160, %s161
      %p172 = scmp.eq.s32.totalorder %s27, 0
      %p173 = por %p171, %p172
      %p174 = scmp.ne.s32.totalorder %s160, %s161
      %p175 = scmp.eq.s32.totalorder %s28, 1
      %p176 = por %p174, %p175
      %p178 = scmp.ne.s32.totalorder %s161, %s177
      %p179 = scmp.eq.s32.totalorder %s28, 0
      %p180 = por %p178, %p179
      %p181 = scmp.le.s32.totalorder 1, %s22
      %p182 = scmp.lt.s32.totalorder %s22, 3
      %p183 = pnand %p181, %p182
      %p184 = pneg %p183
      // Predicated region
      $region9: #{tpu_custom_call.1} parent=5 // pred_check
        _
      $region10: #{tpu_custom_call.1} parent=5 // pred_check_branch
        %186 = sbr.rel (%p183) target = $region12
      $region11: #{tpu_custom_call.1} parent=5 // pred_region
        %s187 = ssub.s32 %s22, 1
        // Predicated region
        $region13: #{tpu_custom_call.1} parent=11 // pred_check
          %p188 = pneg %p69
        $region14: #{tpu_custom_call.1} parent=11 // pred_check_branch
          %190 = sbr.rel (%p188) target = $region16
        $region15: #{tpu_custom_call.1} parent=11 // pred_region
          %s192 = ssub.s32 32, 32
          %193 = vsyncadd [#allocation6], %s192
          %s195 = sshll.u32 [#allocation5], 4
          %s196 = int_to_ptr.vmem [resolvable:$true] %s195
          %198 = dma.hbm_to_vmem [thread:$0]  %s1, 32, %s196, [#allocation6]
        $region16: #{tpu_custom_call.1} parent=11 // pred_fallthru
          _
      $region12: #{tpu_custom_call.1} parent=5 // pred_fallthru
        _
      %p199 = scmp.lt.s32.totalorder %s22, 2
      // Predicated region
      $region17: #{tpu_custom_call.1} parent=5 // pred_check
        %p200 = pneg %p199
      $region18: #{tpu_custom_call.1} parent=5 // pred_check_branch
        %202 = sbr.rel (%p200) target = $region20
      $region19: #{tpu_custom_call.1} parent=5 // pred_region
        // Predicated region
        $region21: #{tpu_custom_call.1} parent=19 // pred_check
          %p203 = pneg %p42
        $region22: #{tpu_custom_call.1} parent=19 // pred_check_branch
          %205 = sbr.rel (%p203) target = $region24
        $region23: #{tpu_custom_call.1} parent=19 // pred_region
          %s206 = sand.u32 %s22, 1
          %s207 = scalar_lea.sflag [#allocation3], %s206
          %s208 = sand.u32 %s32, 1
          %s209 = smul.addr %s208, 8
          %s210 = scalar_lea.vmem [#allocation2], %s209
          %s212 = ssub.s32 128, 128
          %213 = vsyncadd %s207, %s212
          %s214 = smul.addr %s22, 128
          %s215 = scalar_lea.hbm %s0, %s214
          %s217 = sshll.u32 %s210, 4
          %s218 = int_to_ptr.vmem [resolvable:$true] %s217
          %220 = dma.hbm_to_vmem [thread:$0]  %s215, 128, %s218, %s207
        $region24: #{tpu_custom_call.1} parent=19 // pred_fallthru
          _
        // Predicated region
        $region25: #{tpu_custom_call.1} parent=19 // pred_check
          %p221 = pneg %p89
        $region26: #{tpu_custom_call.1} parent=19 // pred_check_branch
          %223 = sbr.rel (%p221) target = $region28
        $region27: #{tpu_custom_call.1} parent=19 // pred_region
          %s224 = sand.u32 %s22, 1
          %s225 = scalar_lea.sflag [#allocation3], %s224
          %s226 = sand.u32 %s79, 1
          %s227 = smul.addr %s226, 8
          %s228 = scalar_lea.vmem [#allocation7], %s227
          %s230 = ssub.s32 128, 128
          %231 = vsyncadd %s225, %s230
          %s232 = smul.addr %s22, 128
          %s233 = scalar_lea.hbm %s2, %s232
          %s235 = sshll.u32 %s228, 4
          %s236 = int_to_ptr.vmem [resolvable:$true] %s235
          %238 = dma.hbm_to_vmem [thread:$0]  %s233, 128, %s236, %s225
        $region28: #{tpu_custom_call.1} parent=19 // pred_fallthru
          _
        // Predicated region
        $region29: #{tpu_custom_call.1} parent=19 // pred_check
          %p239 = pneg %p115
        $region30: #{tpu_custom_call.1} parent=19 // pred_check_branch
          %241 = sbr.rel (%p239) target = $region32
        $region31: #{tpu_custom_call.1} parent=19 // pred_region
          %s242 = sand.u32 %s22, 1
          %s243 = scalar_lea.sflag [#allocation3], %s242
          %s244 = sand.u32 %s105, 1
          %s245 = smul.addr %s244, 8
          %s246 = scalar_lea.vmem [#allocation8], %s245
          %s248 = ssub.s32 128, 128
          %249 = vsyncadd %s243, %s248
          %s250 = smul.addr %s22, 128
          %s251 = scalar_lea.hbm %s3, %s250
          %s253 = sshll.u32 %s246, 4
          %s254 = int_to_ptr.vmem [resolvable:$true] %s253
          %256 = dma.hbm_to_vmem [thread:$0]  %s251, 128, %s254, %s243
        $region32: #{tpu_custom_call.1} parent=19 // pred_fallthru
          _
      $region20: #{tpu_custom_call.1} parent=5 // pred_fallthru
        _
      %p257 = scmp.le.s32.totalorder 1, %s22
      %p258 = scmp.lt.s32.totalorder %s22, 3
      %p259 = pnand %p257, %p258
      %p260 = pneg %p259
      // Predicated region
      $region33: #{tpu_custom_call.1} parent=5 // pred_check
        _
      $region34: #{tpu_custom_call.1} parent=5 // pred_check_branch
        %262 = sbr.rel (%p259) target = $region36
      $region35: #{tpu_custom_call.1} parent=5 // pred_region
        %s263 = ssub.s32 %s22, 1
        %s264 = sand.u32 %s27, 1
        %s265 = scalar_lea.sflag [#allocation3], %s264
        %s266 = sand.u32 %s35, 1
        %s267 = smul.addr %s266, 8
        %s268 = scalar_lea.vmem [#allocation2], %s267
        // Predicated region
        $region37: #{tpu_custom_call.1} parent=35 // pred_check
          %p269 = pneg %p48
        $region38: #{tpu_custom_call.1} parent=35 // pred_check_branch
          %271 = sbr.rel (%p269) target = $region40
        $region39: #{tpu_custom_call.1} parent=35 // pred_region
          %272 = dma.done %s265, 128
        $region40: #{tpu_custom_call.1} parent=35 // pred_fallthru
          _
        // Predicated region
        $region41: #{tpu_custom_call.1} parent=35 // pred_check
          %p273 = pneg %p69
        $region42: #{tpu_custom_call.1} parent=35 // pred_check_branch
          %275 = sbr.rel (%p273) target = $region44
        $region43: #{tpu_custom_call.1} parent=35 // pred_region
          %276 = dma.done [#allocation6], 32
        $region44: #{tpu_custom_call.1} parent=35 // pred_fallthru
          _
        %s277 = sand.u32 %s27, 1
        %s278 = scalar_lea.sflag [#allocation3], %s277
        %s279 = sand.u32 %s82, 1
        %s280 = smul.addr %s279, 8
        %s281 = scalar_lea.vmem [#allocation7], %s280
        // Predicated region
        $region45: #{tpu_custom_call.1} parent=35 // pred_check
          %p282 = pneg %p95
        $region46: #{tpu_custom_call.1} parent=35 // pred_check_branch
          %284 = sbr.rel (%p282) target = $region48
        $region47: #{tpu_custom_call.1} parent=35 // pred_region
          %285 = dma.done %s278, 128
        $region48: #{tpu_custom_call.1} parent=35 // pred_fallthru
          _
        %s286 = sand.u32 %s27, 1
        %s287 = scalar_lea.sflag [#allocation3], %s286
        %s288 = sand.u32 %s108, 1
        %s289 = smul.addr %s288, 8
        %s290 = scalar_lea.vmem [#allocation8], %s289
        // Predicated region
        $region49: #{tpu_custom_call.1} parent=35 // pred_check
          %p291 = pneg %p121
        $region50: #{tpu_custom_call.1} parent=35 // pred_check_branch
          %293 = sbr.rel (%p291) target = $region52
        $region51: #{tpu_custom_call.1} parent=35 // pred_region
          %294 = dma.done %s287, 128
        $region52: #{tpu_custom_call.1} parent=35 // pred_fallthru
          _
        %s295 = sand.u32 %s27, 1
        %s296 = scalar_lea.sflag [#allocation3], %s295
        %s297 = sand.u32 %s35, 1
        %s298 = smul.addr %s297, 8
        %s299 = scalar_lea.vmem [#allocation2], %s298
        %p300 = pneg %p48
        %p301 = pneg %p45
        %p302 = pneg %p69
        %p303 = pneg %p66
        %s304 = sand.u32 %s27, 1
        %s305 = scalar_lea.sflag [#allocation3], %s304
        %s306 = sand.u32 %s82, 1
        %s307 = smul.addr %s306, 8
        %s308 = scalar_lea.vmem [#allocation7], %s307
        %p309 = pneg %p95
        %p310 = pneg %p92
        %s311 = sand.u32 %s27, 1
        %s312 = scalar_lea.sflag [#allocation3], %s311
        %s313 = sand.u32 %s108, 1
        %s314 = smul.addr %s313, 8
        %s315 = scalar_lea.vmem [#allocation8], %s314
        %p316 = pneg %p121
        %p317 = pneg %p118
        %p318 = pneg %p147
        %p319 = pneg %p144
        %s320 = sand.u32 %s134, 1
        %s321 = scalar_lea.sflag [#allocation4], %s320
        %s322 = sand.u32 %s134, 1
        %s323 = smul.addr %s322, 8
        %s324 = scalar_lea.vmem [#allocation9], %s323
        %p325 = pneg %p173
        %p326 = pneg %p170
        %s327 = sand.u32 %s160, 1
        %s328 = scalar_lea.sflag [#allocation11], %s327
        %s329 = sand.u32 %s160, 1
        %s330 = smul.addr %s329, 8
        %s331 = scalar_lea.vmem [#allocation10], %s330
        %v332 = vld [vmem:[%s268] sm:$0xff]
        %v333 = vld [vmem:[#allocation5] sm:$0x1]
        %335 = vset.pattern.permute.xlu0 0
        %336 = vperm.xlu0 %335, %v332
        %v337 = vpop.permute.xlu0 %336
        %v339 = vlaneseq
        %v340 = vshrl.u32 %v339, 7
        %v341 = vsub.s32 0, %v340
        %v342 = vrot.slane %v333, %v341
        %v343 = vmul.f32 %v337, %v342
        %v344 = vld [vmem:[#allocation5 + $0x1] sm:$0x1]
        %345 = vset.pattern.permute.xlu0 1
        %346 = vperm.xlu0 %345, %v332
        %v347 = vpop.permute.xlu0 %346
        %v349 = vlaneseq
        %v350 = vshrl.u32 %v349, 7
        %v351 = vsub.s32 0, %v350
        %v352 = vrot.slane %v344, %v351
        %v353 = vmul.f32 %v347, %v352
        %v354 = vadd.f32 %v343, %v353
        %v355 = vand.u32 2147483647, %v354
        %vm356 = vcmp.le.f32.partialorder %v355, 0.7853982
        %vm357 = vcmp.lt.s32.totalorder %v354, 0
        %v358 = vand.u32 %v354, 2139095040
        %v359 = vshrl.u32 %v358, 23
        %v360 = vsub.s32 %v359, 127
        %v361 = vand.u32 2147483647, %v354
        %v362 = vand.u32 %v361, 8388607
        %v363 = vor.u32 %v362, 8388608
        %v364 = vsub.s32 0, %v363
        %v365 = vadd.s32 %v360, 1
        %vm366 = vcmp.gt.s32.totalorder %v365, 0
        %v367 = vsel %vm366, %v365, 0
        %v368 = vshrl.u32 %v367, 5
        %v369 = vand.u32 %v367, 31
        %v370 = vsub.s32 32, %v369
        %v371 = vshrl.u32 683565275, %v370
        %v372 = vshll.u32 683565275, %v369
        %v373 = vshrl.u32 2475754826, %v370
        %v374 = vor.u32 %v372, %v373
        %v375 = vshll.u32 2475754826, %v369
        %v376 = vshrl.u32 2131351028, %v370
        %v377 = vor.u32 %v375, %v376
        %v378 = vshll.u32 2131351028, %v369
        %v379 = vshrl.u32 2102212464, %v370
        %v380 = vor.u32 %v378, %v379
        %v381 = vshll.u32 2102212464, %v369
        %v382 = vshrl.u32 920167782, %v370
        %v383 = vor.u32 %v381, %v382
        %v384 = vshll.u32 920167782, %v369
        %v385 = vshrl.u32 1326507024, %v370
        %v386 = vor.u32 %v384, %v385
        %vm387 = vcmp.lt.s32.totalorder %v368, 1
        %vm388 = vcmp.lt.s32.totalorder %v368, 2
        %vm389 = vcmp.lt.s32.totalorder %v368, 3
        %vm390 = vcmp.lt.s32.totalorder %v368, 4
        %v391 = vsel %vm387, %v371, %v374
        %v392 = vsel %vm390, %v380, 2102212464
        %v393 = vsel %vm389, %v377, %v392
        %v394 = vsel %vm388, %v391, %v393
        %v395 = vsel %vm387, %v374, %v377
        %v396 = vsel %vm390, %v383, 920167782
        %v397 = vsel %vm389, %v380, %v396
        %v398 = vsel %vm388, %v395, %v397
        %v399 = vsel %vm387, %v377, %v380
        %v400 = vsel %vm390, %v386, 1326507024
        %v401 = vsel %vm389, %v383, %v400
        %v402 = vsel %vm388, %v399, %v401
        %v403 = vshll.u32 %v363, 8
        %v404 = vmul.u32.u64.compose %v403, %v402
        %v405 = vextract.low.u32 %v404
        %v406 = vextract.high.u32 %v404
        %v407 = vmul.u32.u64.compose %v403, %v398
        %v408 = vextract.low.u32 %v407
        %v409 = vextract.high.u32 %v407
        %v410 = vmul.u32 %v403, %v394
        %v411 = vadd.s32 %v406, %v408
        %vm412 = vc.u32 %v406, %v408
        %v413 = vadd.s32 %v409, 1
        %v414 = vsel %vm412, %v413, %v409
        %v415 = vadd.s32 %v410, %v414
        %v416 = vadd.s32 %v415, 536870912
        %v417 = vshrl.u32 %v416, 30
        %v418 = vshll.u32 %v417, 30
        %v419 = vsub.s32 %v415, %v418
        %vm420 = vcmp.lt.s32.totalorder %v419, 0
        %v421 = vsub.s32 0, %v419
        %v422 = vsel %vm420, %v421, %v419
        %v423 = vclz %v422
        %v424 = vsub.s32 %v423, 2
        %vm425 = vcmp.gt.s32.totalorder 0, %v424
        %v426 = vsel %vm425, 0, %v424
        %v427 = vsub.s32 32, %v426
        %v428 = vshll.u32 %v419, %v426
        %v429 = vshrl.u32 %v411, %v427
        %v430 = vor.u32 %v428, %v429
        %v431 = vsub.s32 4294967266, %v426
        %v432 = vadd.s32 %v431, 127
        %v433 = vshll.u32 %v432, 23
        %v434 = vor.u32 4788187, %v433
        %v435 = vand.u32 2147483647, %v434
        %v437 = vcvt.s32.f32 %v430
        %v438 = vmul.f32 %v437, %v435
        %v439 = vxor.u32 %v438, 2147483648
        %v440 = vsel %vm357, %v439, %v438
        %v441 = vsub.s32 4, %v417
        %v442 = vsel %vm357, %v441, %v417
        %v443 = vsel %vm356, %v354, %v440
        %v444 = vsel %vm356, 0, %v442
        %v445 = vcosq.f32.pop %v443
        %v446 = vsinq.f32.pop %v443
        %vm447 = vweird.f32 %v354
        %v448 = vand.u32 %v444, 3
        %vm449 = vcmp.lt.s32.totalorder %v448, 2
        %vm450 = vcmp.eq.s32.totalorder %v448, 0
        %v451 = vxor.u32 %v446, 2147483648
        %v452 = vsel %vm450, %v445, %v451
        %vm453 = vcmp.eq.s32.totalorder %v448, 2
        %v454 = vxor.u32 %v445, 2147483648
        %v455 = vsel %vm453, %v454, %v446
        %v456 = vsel %vm449, %v452, %v455
        %v457 = vsel %vm447, nan, %v456
        %v458 = vand.u32 2147483647, %v354
        %vm459 = vcmp.le.f32.partialorder %v458, 0.7853982
        %vm460 = vcmp.lt.s32.totalorder %v354, 0
        %v461 = vand.u32 %v354, 2139095040
        %v462 = vshrl.u32 %v461, 23
        %v463 = vsub.s32 %v462, 127
        %v464 = vand.u32 2147483647, %v354
        %v465 = vand.u32 %v464, 8388607
        %v466 = vor.u32 %v465, 8388608
        %v467 = vsub.s32 0, %v466
        %v468 = vadd.s32 %v463, 1
        %vm469 = vcmp.gt.s32.totalorder %v468, 0
        %v470 = vsel %vm469, %v468, 0
        %v471 = vshrl.u32 %v470, 5
        %v472 = vand.u32 %v470, 31
        %v473 = vsub.s32 32, %v472
        %v474 = vshrl.u32 683565275, %v473
        %v475 = vshll.u32 683565275, %v472
        %v476 = vshrl.u32 2475754826, %v473
        %v477 = vor.u32 %v475, %v476
        %v478 = vshll.u32 2475754826, %v472
        %v479 = vshrl.u32 2131351028, %v473
        %v480 = vor.u32 %v478, %v479
        %v481 = vshll.u32 2131351028, %v472
        %v482 = vshrl.u32 2102212464, %v473
        %v483 = vor.u32 %v481, %v482
        %v484 = vshll.u32 2102212464, %v472
        %v485 = vshrl.u32 920167782, %v473
        %v486 = vor.u32 %v484, %v485
        %v487 = vshll.u32 920167782, %v472
        %v488 = vshrl.u32 1326507024, %v473
        %v489 = vor.u32 %v487, %v488
        %vm490 = vcmp.lt.s32.totalorder %v471, 1
        %vm491 = vcmp.lt.s32.totalorder %v471, 2
        %vm492 = vcmp.lt.s32.totalorder %v471, 3
        %vm493 = vcmp.lt.s32.totalorder %v471, 4
        %v494 = vsel %vm490, %v474, %v477
        %v495 = vsel %vm493, %v483, 2102212464
        %v496 = vsel %vm492, %v480, %v495
        %v497 = vsel %vm491, %v494, %v496
        %v498 = vsel %vm490, %v477, %v480
        %v499 = vsel %vm493, %v486, 920167782
        %v500 = vsel %vm492, %v483, %v499
        %v501 = vsel %vm491, %v498, %v500
        %v502 = vsel %vm490, %v480, %v483
        %v503 = vsel %vm493, %v489, 1326507024
        %v504 = vsel %vm492, %v486, %v503
        %v505 = vsel %vm491, %v502, %v504
        %v506 = vshll.u32 %v466, 8
        %v507 = vmul.u32.u64.compose %v506, %v505
        %v508 = vextract.low.u32 %v507
        %v509 = vextract.high.u32 %v507
        %v510 = vmul.u32.u64.compose %v506, %v501
        %v511 = vextract.low.u32 %v510
        %v512 = vextract.high.u32 %v510
        %v513 = vmul.u32 %v506, %v497
        %v514 = vadd.s32 %v509, %v511
        %vm515 = vc.u32 %v509, %v511
        %v516 = vadd.s32 %v512, 1
        %v517 = vsel %vm515, %v516, %v512
        %v518 = vadd.s32 %v513, %v517
        %v519 = vadd.s32 %v518, 536870912
        %v520 = vshrl.u32 %v519, 30
        %v521 = vshll.u32 %v520, 30
        %v522 = vsub.s32 %v518, %v521
        %vm523 = vcmp.lt.s32.totalorder %v522, 0
        %v524 = vsub.s32 0, %v522
        %v525 = vsel %vm523, %v524, %v522
        %v526 = vclz %v525
        %v527 = vsub.s32 %v526, 2
        %vm528 = vcmp.gt.s32.totalorder 0, %v527
        %v529 = vsel %vm528, 0, %v527
        %v530 = vsub.s32 32, %v529
        %v531 = vshll.u32 %v522, %v529
        %v532 = vshrl.u32 %v514, %v530
        %v533 = vor.u32 %v531, %v532
        %v534 = vsub.s32 4294967266, %v529
        %v535 = vadd.s32 %v534, 127
        %v536 = vshll.u32 %v535, 23
        %v537 = vor.u32 4788187, %v536
        %v538 = vand.u32 2147483647, %v537
        %v540 = vcvt.s32.f32 %v533
        %v541 = vmul.f32 %v540, %v538
        %v542 = vxor.u32 %v541, 2147483648
        %v543 = vsel %vm460, %v542, %v541
        %v544 = vsub.s32 4, %v520
        %v545 = vsel %vm460, %v544, %v520
        %v546 = vsel %vm459, %v354, %v543
        %v547 = vsel %vm459, 0, %v545
        %v548 = vcosq.f32.pop %v546
        %v549 = vsinq.f32.pop %v546
        %vm550 = vweird.f32 %v354
        %v551 = vadd.s32 %v547, 3
        %v552 = vand.u32 %v551, 3
        %vm553 = vcmp.lt.s32.totalorder %v552, 2
        %vm554 = vcmp.eq.s32.totalorder %v552, 0
        %v555 = vxor.u32 %v549, 2147483648
        %v556 = vsel %vm554, %v548, %v555
        %vm557 = vcmp.eq.s32.totalorder %v552, 2
        %v558 = vxor.u32 %v548, 2147483648
        %v559 = vsel %vm557, %v558, %v549
        %v560 = vsel %vm553, %v556, %v559
        %v561 = vsel %vm550, nan, %v560
        %v562 = vlaneseq
        %v563 = vand.u32 %v562, 127
        %v564 = vand.u32 %v563, 1
        %vm565 = vcmp.eq.s32.totalorder %v564, 0
        %v566 = vsub.f32 0.0, %v561
        %v567 = vsel %vm565, %v566, %v561
        %v568 = vld [vmem:[%s281] sm:$0xff]
        %569 = vrot.lane.b32.xlu0 %v568, 127
        %v570 = vpop.permute.xlu0 %569
        %571 = vrot.lane.b32.xlu0 %v568, 1
        %v572 = vpop.permute.xlu0 %571
        %v573 = vsel %vm565, %v570, %v572
        %v574 = vmul.f32 %v568, %v457
        %v575 = vmul.f32 %v573, %v567
        %v576 = vadd.f32 %v574, %v575
        %577 = vst [vmem:[%s324] sm:$0xff] %v576
        %v578 = vld [vmem:[%s290] sm:$0xff]
        %579 = vrot.lane.b32.xlu0 %v578, 127
        %v580 = vpop.permute.xlu0 %579
        %581 = vrot.lane.b32.xlu0 %v578, 1
        %v582 = vpop.permute.xlu0 %581
        %v583 = vsel %vm565, %v580, %v582
        %v584 = vmul.f32 %v578, %v457
        %v585 = vmul.f32 %v583, %v567
        %v586 = vadd.f32 %v584, %v585
        %587 = vst [vmem:[%s331] sm:$0xff] %v586
        %s588 = sand.u32 %s134, 1
        %s589 = scalar_lea.sflag [#allocation4], %s588
        %s590 = sand.u32 %s134, 1
        %s591 = smul.addr %s590, 8
        %s592 = scalar_lea.vmem [#allocation9], %s591
        %s593 = sand.u32 %s160, 1
        %s594 = scalar_lea.sflag [#allocation11], %s593
        %s595 = sand.u32 %s160, 1
        %s596 = smul.addr %s595, 8
        %s597 = scalar_lea.vmem [#allocation10], %s596
        // Predicated region
        $region53: #{tpu_custom_call.1} parent=35 // pred_check
          %p598 = pneg %p144
        $region54: #{tpu_custom_call.1} parent=35 // pred_check_branch
          %600 = sbr.rel (%p598) target = $region56
        $region55: #{tpu_custom_call.1} parent=35 // pred_region
          %s602 = ssub.s32 128, 128
          %603 = vsyncadd %s589, %s602
          %s604 = smul.addr %s27, 128
          %s605 = scalar_lea.hbm %s4, %s604
          %s607 = sshll.u32 %s592, 4
          %s608 = int_to_ptr.vmem [resolvable:$true] %s607
          %610 = dma.vmem_to_hbm [thread:$0]  %s608, 128, %s605, %s589
        $region56: #{tpu_custom_call.1} parent=35 // pred_fallthru
          _
        // Predicated region
        $region57: #{tpu_custom_call.1} parent=35 // pred_check
          %p611 = pneg %p170
        $region58: #{tpu_custom_call.1} parent=35 // pred_check_branch
          %613 = sbr.rel (%p611) target = $region60
        $region59: #{tpu_custom_call.1} parent=35 // pred_region
          %s615 = ssub.s32 128, 128
          %616 = vsyncadd %s594, %s615
          %s617 = smul.addr %s27, 128
          %s618 = scalar_lea.hbm %s5, %s617
          %s620 = sshll.u32 %s597, 4
          %s621 = int_to_ptr.vmem [resolvable:$true] %s620
          %623 = dma.vmem_to_hbm [thread:$0]  %s621, 128, %s618, %s594
        $region60: #{tpu_custom_call.1} parent=35 // pred_fallthru
          _
      $region36: #{tpu_custom_call.1} parent=5 // pred_fallthru
        _
      %p624 = scmp.le.s32.totalorder 2, %s22
      // Predicated region
      $region61: #{tpu_custom_call.1} parent=5 // pred_check
        %p625 = pneg %p624
      $region62: #{tpu_custom_call.1} parent=5 // pred_check_branch
        %627 = sbr.rel (%p625) target = $region64
      $region63: #{tpu_custom_call.1} parent=5 // pred_region
        %s628 = ssub.s32 %s22, 2
        // Predicated region
        $region65: #{tpu_custom_call.1} parent=63 // pred_check
          %p629 = pneg %p150
        $region66: #{tpu_custom_call.1} parent=63 // pred_check_branch
          %631 = sbr.rel (%p629) target = $region68
        $region67: #{tpu_custom_call.1} parent=63 // pred_region
          %s632 = sand.u32 %s135, 1
          %s633 = scalar_lea.sflag [#allocation4], %s632
          %s634 = sand.u32 %s135, 1
          %s635 = smul.addr %s634, 8
          %s636 = scalar_lea.vmem [#allocation9], %s635
          %637 = dma.done %s633, 128
        $region68: #{tpu_custom_call.1} parent=63 // pred_fallthru
          _
        // Predicated region
        $region69: #{tpu_custom_call.1} parent=63 // pred_check
          %p638 = pneg %p176
        $region70: #{tpu_custom_call.1} parent=63 // pred_check_branch
          %640 = sbr.rel (%p638) target = $region72
        $region71: #{tpu_custom_call.1} parent=63 // pred_region
          %s641 = sand.u32 %s161, 1
          %s642 = scalar_lea.sflag [#allocation11], %s641
          %s643 = sand.u32 %s161, 1
          %s644 = smul.addr %s643, 8
          %s645 = scalar_lea.vmem [#allocation10], %s644
          %646 = dma.done %s642, 128
        $region72: #{tpu_custom_call.1} parent=63 // pred_fallthru
          _
      $region64: #{tpu_custom_call.1} parent=5 // pred_fallthru
        _
    $region6: #{tpu_custom_call.1} parent=1 // loop_footer
      %s26 = sadd.s32 1, %s22
    $region7: #{tpu_custom_call.1} parent=1 // loop_footer_branch
      %21 = sbr.rel target = $region3
    $region8: #{tpu_custom_call.1} parent=1 // loop_exit
      _
    %647 = vsyncpa [#allocation3], 1
    %s648 = scalar_lea.sflag [#allocation3], 1
    %649 = vsyncpa %s648, 1
    %650 = vsyncpa [#allocation6], 1
    %651 = vsyncpa [#allocation4], 1
    %s652 = scalar_lea.sflag [#allocation4], 1
    %653 = vsyncpa %s652, 1
    %654 = vsyncpa [#allocation11], 1
    %s655 = scalar_lea.sflag [#allocation11], 1
    %656 = vsyncpa %s655, 1

</llo_original>
